<compile_context>
chip_gen: v7x
topology: tpu7x:2x2x1
jax: 0.10.0
libtpu: 0.0.40
codegen_flags: <defaults>
</compile_context>

<pallas_src>
import functools

import jax
import jax.numpy as jnp
from jax import lax
from jax.experimental import pallas as pl
from jax.experimental.pallas import tpu as pltpu


def _avgpool_kernel(x_ref, c_ref, o_ref, *, k, pad, W, HWP):
    """One block: x_ref (BC, HWP); c_ref (2*(k-1)+1, HWP) f32 constants.

    c_ref rows: [0, k-1)      horizontal 0/1 edge masks (taps d != 0)
                [k-1, 2k-2)   vertical   0/1 edge masks
                last          exact 1/count (count_include_pad=False)
    """
    x = x_ref[...].astype(jnp.float32)            # (BC, HWP)
    c = c_ref[...]                                # (2k-1, HWP)

    m = 0
    # ---- Horizontal (W) pass: hsum[j] = sum of valid x[j + d] --------------
    hsum = x
    for d in range(-pad, k - pad):
        if d == 0:
            continue
        shifted = pltpu.roll(x, shift=(-d) % HWP, axis=1)       # val at j = x[j+d]
        hsum = hsum + c[m:m + 1, :] * shifted
        m += 1

    # ---- Vertical (H) pass on row sums: shift by d*W in flat index ---------
    acc = hsum
    for d in range(-pad, k - pad):
        if d == 0:
            continue
        shifted = pltpu.roll(hsum, shift=(-d * W) % HWP, axis=1)  # hsum[j+d*W]
        acc = acc + c[m:m + 1, :] * shifted
        m += 1

    # ---- Scale by exact 1/count (count_include_pad=False) ------------------
    o_ref[...] = (acc * c[m:m + 1, :]).astype(o_ref.dtype)


def _pick_block_channels(B, HWP, in_itemsize, out_itemsize,
                         budget_bytes=24 * 1024 * 1024):
    """Rows per block, sized against the real VMEM footprint.

    Per-row footprint: double-buffered input + output blocks in their own
    dtypes, plus ~4 full-width f32 temporaries (x upcast, hsum, acc, shifted).
    """
    per_row = HWP * (2 * in_itemsize + 2 * out_itemsize + 4 * 4)
    bc = max(1, budget_bytes // per_row)
    if B >= 16:
        bc = min(bc, pl.cdiv(B, 2))        # >= 2 grid steps: pipeline + 2 TCs
    if bc >= B:
        return B                           # single block == full dim (allowed)
    bc = max(8, (bc // 8) * 8)             # sublane-aligned block height
    return min(bc, B)


def pooling_forward(x, kernel_size=3):
    """Pallas equivalent of POOLING.forward: AvgPool2d(k, stride=1, padding=1,
    count_include_pad=False). Requires kernel_size >= 3 so out <= in."""
    stride, pad = 1, 1
    k = kernel_size
    assert stride == 1 and pad == 1 and k >= 3
    N, C, H, W = x.shape
    outH = H + 2 * pad - k + 1
    outW = W + 2 * pad - k + 1
    B, HW = N * C, H * W
    HWP = ((HW + 127) // 128) * 128        # lane-pad => unmasked full-width vst

    xf = x.reshape(B, HW)                  # contiguous reshape: free
    if HWP != HW:
        xf = jnp.pad(xf, ((0, 0), (0, HWP - HW)))

    # ---- Host-side constants: edge masks + exact reciprocal counts ---------
    cols = jnp.arange(W, dtype=jnp.int32)
    rows = jnp.arange(H, dtype=jnp.int32)
    const_rows = []
    for d in range(-pad, k - pad):         # horizontal masks
        if d == 0:
            continue
        mw = (cols <= W - 1 - d) if d > 0 else (cols >= -d)
        const_rows.append(jnp.broadcast_to(mw[None, :], (H, W)))
    for d in range(-pad, k - pad):         # vertical masks
        if d == 0:
            continue
        mh = (rows <= H - 1 - d) if d > 0 else (rows >= -d)
        const_rows.append(jnp.broadcast_to(mh[:, None], (H, W)))
    cnt_w = (jnp.minimum(cols + (k - 1 - pad), W - 1)
             - jnp.maximum(cols - pad, 0) + 1)
    cnt_h = (jnp.minimum(rows + (k - 1 - pad), H - 1)
             - jnp.maximum(rows - pad, 0) + 1)
    inv_cnt = 1.0 / (cnt_h[:, None] * cnt_w[None, :]).astype(jnp.float32)
    const_rows.append(inv_cnt)
    consts = jnp.stack([r.astype(jnp.float32).reshape(HW) for r in const_rows], 0)
    if HWP != HW:
        consts = jnp.pad(consts, ((0, 0), (0, HWP - HW)))
    nrows = consts.shape[0]                # 2*(k-1) + 1

    BC = _pick_block_channels(B, HWP, x.dtype.itemsize, x.dtype.itemsize)
    grid = (pl.cdiv(B, BC),)

    # TODO(synk): very large feature maps (8 * HWP * ~32B > vmem_limit) need an
    # extra halo-aware H-tiled grid axis; not required at these sizes.

    kern = functools.partial(_avgpool_kernel, k=k, pad=pad, W=W, HWP=HWP)
    cost = pl.CostEstimate(
        flops=10 * B * HW,
        transcendentals=0,
        bytes_accessed=2 * B * HW * x.dtype.itemsize + int(consts.size) * 4,
    )

    out_flat = pl.pallas_call(
        kern,
        out_shape=jax.ShapeDtypeStruct((B, HWP), x.dtype),
        grid=grid,
        in_specs=[
            pl.BlockSpec((BC, HWP), lambda b: (b, 0)),
            pl.BlockSpec((nrows, HWP), lambda b: (0, 0)),
        ],
        out_specs=pl.BlockSpec((BC, HWP), lambda b: (b, 0)),
        compiler_params=pltpu.CompilerParams(
            dimension_semantics=("parallel",),
            vmem_limit_bytes=48 * 1024 * 1024,
        ),
        cost_estimate=cost,
    )(xf, consts)

    out = out_flat[:, :HW].reshape(N, C, H, W)
    if outH != H or outW != W:             # only for k > 3; identity for k == 3
        out = out[:, :, :outH, :outW]
    return out


def _reference_avgpool(x, k=3, pad=1):
    # Pure-JAX reference: window sum / count of non-pad elements.
    dims = (1, 1, k, k)
    strides = (1, 1, 1, 1)
    padcfg = [(0, 0), (0, 0), (pad, pad), (pad, pad)]
    s = lax.reduce_window(x, 0.0, lax.add, dims, strides, padcfg)
    c = lax.reduce_window(jnp.ones_like(x), 0.0, lax.add, dims, strides, padcfg)
    return s / c


if __name__ == "__main__":
    key = jax.random.PRNGKey(0)
    x = jax.random.normal(key, (2, 4, 16, 16), dtype=jnp.float32)

    out = pooling_forward(x, kernel_size=3)
    out = jax.block_until_ready(out)

    ref = _reference_avgpool(x, k=3, pad=1)
    assert out.shape == ref.shape
    assert jnp.allclose(out, ref, atol=1e-5, rtol=1e-5)

    print("KERNEL_OK")
</pallas_src>

<mosaic_0001>
module attributes {stable_mosaic.version = 11 : i64} {
  func.func @_avgpool_kernel(%arg0: i32, %arg1: memref<8x256xf32, #tpu.memory_space<vmem>>, %arg2: memref<5x256xf32, #tpu.memory_space<vmem>>, %arg3: memref<8x256xf32, #tpu.memory_space<vmem>>) attributes {dimension_semantics = [#tpu.dimension_semantics<parallel>], iteration_bounds = array<i64: 1>, scalar_prefetch = 0 : i64, scratch_operands = 0 : i64, tpu.core_type = #tpu.core_type<tc>, window_params = [{transform_indices = @transform_0, window_bounds = array<i64: 8, 256>}, {pipeline_mode = #tpu.pipeline_mode<synchronous>, transform_indices = @transform_1, window_bounds = array<i64: 5, 256>}, {transform_indices = @transform_2, window_bounds = array<i64: 8, 256>}]} {
    %c0 = arith.constant 0 : index
    %c0_0 = arith.constant 0 : index
    %0 = vector.load %arg1[%c0, %c0_0] : memref<8x256xf32, #tpu.memory_space<vmem>>, vector<8x256xf32>
    %c0_1 = arith.constant 0 : index
    %c0_2 = arith.constant 0 : index
    %1 = vector.load %arg2[%c0_1, %c0_2] : memref<5x256xf32, #tpu.memory_space<vmem>>, vector<5x256xf32>
    %c1_i32 = arith.constant 1 : i32
    %2 = tpu.dynamic_rotate %0 by %c1_i32 dim 1 : vector<8x256xf32>, i32 -> vector<8x256xf32>
    %3 = vector.extract_strided_slice %1 {offsets = [0, 0], sizes = [1, 256], strides = [1, 1]} : vector<5x256xf32> to vector<1x256xf32>
    %4 = vector.broadcast %3 : vector<1x256xf32> to vector<8x256xf32>
    %5 = arith.mulf %4, %2 : vector<8x256xf32>
    %6 = arith.addf %0, %5 : vector<8x256xf32>
    %c255_i32 = arith.constant 255 : i32
    %7 = tpu.dynamic_rotate %0 by %c255_i32 dim 1 : vector<8x256xf32>, i32 -> vector<8x256xf32>
    %8 = vector.extract_strided_slice %1 {offsets = [1, 0], sizes = [1, 256], strides = [1, 1]} : vector<5x256xf32> to vector<1x256xf32>
    %9 = vector.broadcast %8 : vector<1x256xf32> to vector<8x256xf32>
    %10 = arith.mulf %9, %7 : vector<8x256xf32>
    %11 = arith.addf %6, %10 : vector<8x256xf32>
    %c16_i32 = arith.constant 16 : i32
    %12 = tpu.dynamic_rotate %11 by %c16_i32 dim 1 : vector<8x256xf32>, i32 -> vector<8x256xf32>
    %13 = vector.extract_strided_slice %1 {offsets = [2, 0], sizes = [1, 256], strides = [1, 1]} : vector<5x256xf32> to vector<1x256xf32>
    %14 = vector.broadcast %13 : vector<1x256xf32> to vector<8x256xf32>
    %15 = arith.mulf %14, %12 : vector<8x256xf32>
    %16 = arith.addf %11, %15 : vector<8x256xf32>
    %c240_i32 = arith.constant 240 : i32
    %17 = tpu.dynamic_rotate %11 by %c240_i32 dim 1 : vector<8x256xf32>, i32 -> vector<8x256xf32>
    %18 = vector.extract_strided_slice %1 {offsets = [3, 0], sizes = [1, 256], strides = [1, 1]} : vector<5x256xf32> to vector<1x256xf32>
    %19 = vector.broadcast %18 : vector<1x256xf32> to vector<8x256xf32>
    %20 = arith.mulf %19, %17 : vector<8x256xf32>
    %21 = arith.addf %16, %20 : vector<8x256xf32>
    %22 = vector.extract_strided_slice %1 {offsets = [4, 0], sizes = [1, 256], strides = [1, 1]} : vector<5x256xf32> to vector<1x256xf32>
    %23 = vector.broadcast %22 : vector<1x256xf32> to vector<8x256xf32>
    %24 = arith.mulf %21, %23 : vector<8x256xf32>
    %c0_3 = arith.constant 0 : index
    %c0_4 = arith.constant 0 : index
    %25 = vector.load %arg3[%c0_3, %c0_4] : memref<8x256xf32, #tpu.memory_space<vmem>>, vector<8x256xf32>
    tpu.vector_store %arg3[%c0_3, %c0_4], %24 {strides = array<i32>} : memref<8x256xf32, #tpu.memory_space<vmem>>, vector<8x256xf32>,
    return
  }
  func.func @transform_0(%arg0: i32) -> (i32, i32) {
    %c0_i32 = arith.constant 0 : i32
    %c0_i32_0 = arith.constant 0 : i32
    return %arg0, %c0_i32 : i32, i32
  }
  func.func @transform_1(%arg0: i32) -> (i32, i32) {
    %c0_i32 = arith.constant 0 : i32
    %c0_i32_0 = arith.constant 0 : i32
    %c0_i32_1 = arith.constant 0 : i32
    return %c0_i32, %c0_i32_0 : i32, i32
  }
  func.func @transform_2(%arg0: i32) -> (i32, i32) {
    %c0_i32 = arith.constant 0 : i32
    %c0_i32_0 = arith.constant 0 : i32
    return %arg0, %c0_i32 : i32, i32
  }
}

</mosaic_0001>

<llo_original>
// kernel: tpu_custom_call.1
$region0: #{tpu_custom_call.1}
  #allocation0 [shape = 'u32[]', space=smem, size = 0x4, offset = 0x4, fixed_abs, tag = 'smem constant byte address 0x4 - core index']
  #allocation1 [shape = 'u32[144,128]{1,0:T(1,128)}', space=vmem, size = 0x12000, scoped, tag = 'internal scratch']
  %s0 = inlined_call_operand.hbm [shape: f32[8,256], index: 0, kind: input, shape index: {}]
  %s1 = inlined_call_operand.hbm [shape: f32[5,256], index: 1, kind: input, shape index: {}]
  %s2 = inlined_call_operand.hbm [shape: f32[8,256], index: 2, kind: output, shape index: {}]
  %s3 = sld [smem:[#allocation0]]
  $region26: #{tpu_custom_call.1} parent=0
    _
  %s5 = ssub.s32 1, %s3
  %s6 = scalar_select 0, %s5, %s3
  $region1: #{tpu_custom_call.1} parent=0
    #allocation2 [shape = 'u8[8192]{0}', space=vmem, size = 0x2000, scoped, tag = 'input window, operand 0, single buffered']
    #allocation3 [shape = 's32[1]{0}', space=sflag, size = 0x4, scoped, tag = 'scoped memory for tpu_custom_call.1']
    #allocation4 [shape = 's32[1]{0}', space=sflag, size = 0x4, scoped, tag = 'scoped memory for tpu_custom_call.1']
    #allocation5 [shape = 'u8[8192]{0}', space=vmem, size = 0x2000, scoped, tag = 'input window, operand 1, single buffered']
    #allocation6 [shape = 's32[1]{0}', space=sflag, size = 0x4, scoped, tag = 'scoped memory for tpu_custom_call.1']
    #allocation7 [shape = 'u8[8192]{0}', space=vmem, size = 0x2000, scoped, tag = 'output window, operand 0, single buffered']
    %7 = vsyncpa [#allocation3], 0
    %8 = vsyncpa [#allocation6], 0
    %9 = vsyncpa [#allocation4], 0
    // Predicated region
    $region2: #{tpu_custom_call.1} parent=1 // pred_check
      _
    $region3: #{tpu_custom_call.1} parent=1 // pred_check_branch
      %11 = sbr.rel (0) target = $region5
    $region4: #{tpu_custom_call.1} parent=1 // pred_region
      %s13 = ssub.s32 256, 256
      %14 = vsyncadd [#allocation3], %s13
      %s16 = sshll.u32 [#allocation2], 4
      %s17 = int_to_ptr.vmem [resolvable:$true] %s16
      %19 = dma.hbm_to_vmem [thread:$0]  %s0, 256, %s17, [#allocation3]
    $region5: #{tpu_custom_call.1} parent=1 // pred_fallthru
      _
    // Predicated region
    $region6: #{tpu_custom_call.1} parent=1 // pred_check
      _
    $region7: #{tpu_custom_call.1} parent=1 // pred_check_branch
      %21 = sbr.rel (0) target = $region9
    $region8: #{tpu_custom_call.1} parent=1 // pred_region
      %s23 = ssub.s32 256, 256
      %24 = vsyncadd [#allocation6], %s23
      %s26 = sshll.u32 [#allocation5], 4
      %s27 = int_to_ptr.vmem [resolvable:$true] %s26
      %29 = dma.hbm_to_vmem [thread:$0]  %s1, 256, %s27, [#allocation6]
    $region9: #{tpu_custom_call.1} parent=1 // pred_fallthru
      _
    // Predicated region
    $region10: #{tpu_custom_call.1} parent=1 // pred_check
      _
    $region11: #{tpu_custom_call.1} parent=1 // pred_check_branch
      %31 = sbr.rel (0) target = $region13
    $region12: #{tpu_custom_call.1} parent=1 // pred_region
      %32 = dma.done [#allocation3], 256
    $region13: #{tpu_custom_call.1} parent=1 // pred_fallthru
      _
    // Predicated region
    $region14: #{tpu_custom_call.1} parent=1 // pred_check
      _
    $region15: #{tpu_custom_call.1} parent=1 // pred_check_branch
      %34 = sbr.rel (0) target = $region17
    $region16: #{tpu_custom_call.1} parent=1 // pred_region
      %35 = dma.done [#allocation6], 256
    $region17: #{tpu_custom_call.1} parent=1 // pred_fallthru
      _
    %v36 = vld [vmem:[#allocation2] sm:$0xff]
    %v37 = vld [vmem:[#allocation2 + $0x8] sm:$0xff]
    %v38 = vld [vmem:[#allocation5] sm:$0x1f]
    %v39 = vld [vmem:[#allocation5 + $0x8] sm:$0x1f]
    %40 = vrot.lane.b32.xlu0 %v36, 1
    %v41 = vpop.permute.xlu0 %40
    %42 = vrot.lane.b32.xlu0 %v37, 1
    %v43 = vpop.permute.xlu0 %42
    %v44 = vlaneseq
    %v45 = vand.u32 %v44, 127
    %vm46 = vcmp.lt.s32.totalorder %v45, 1
    %v47 = vsel %vm46, %v41, %v43
    %v48 = vsel %vm46, %v43, %v41
    %v49 = vlaneseq
    %v50 = vshrl.u32 %v49, 7
    %v51 = vsub.s32 0, %v50
    %v52 = vrot.slane %v38, %v51
    %v53 = vlaneseq
    %v54 = vshrl.u32 %v53, 7
    %v55 = vsub.s32 0, %v54
    %v56 = vrot.slane %v39, %v55
    %v57 = vmul.f32 %v52, %v48
    %v58 = vmul.f32 %v56, %v47
    %v59 = vadd.f32 %v36, %v57
    %v60 = vadd.f32 %v37, %v58
    %61 = vrot.lane.b32.xlu0 %v36, 127
    %v62 = vpop.permute.xlu0 %61
    %63 = vrot.lane.b32.xlu0 %v37, 127
    %v64 = vpop.permute.xlu0 %63
    %vm65 = vcmp.lt.s32.totalorder %v45, 127
    %v66 = vsel %vm65, %v62, %v64
    %v67 = vsel %vm65, %v64, %v62
    %v68 = vlaneseq
    %v69 = vshrl.u32 %v68, 7
    %v70 = vsub.s32 1, %v69
    %v71 = vrot.slane %v38, %v70
    %v72 = vlaneseq
    %v73 = vshrl.u32 %v72, 7
    %v74 = vsub.s32 1, %v73
    %v75 = vrot.slane %v39, %v74
    %v76 = vmul.f32 %v71, %v66
    %v77 = vmul.f32 %v75, %v67
    %v78 = vadd.f32 %v59, %v76
    %v79 = vadd.f32 %v60, %v77
    %80 = vrot.lane.b32.xlu0 %v78, 16
    %v81 = vpop.permute.xlu0 %80
    %82 = vrot.lane.b32.xlu0 %v79, 16
    %v83 = vpop.permute.xlu0 %82
    %vm84 = vcmp.lt.s32.totalorder %v45, 16
    %v85 = vsel %vm84, %v81, %v83
    %v86 = vsel %vm84, %v83, %v81
    %v87 = vlaneseq
    %v88 = vshrl.u32 %v87, 7
    %v89 = vsub.s32 2, %v88
    %v90 = vrot.slane %v38, %v89
    %v91 = vlaneseq
    %v92 = vshrl.u32 %v91, 7
    %v93 = vsub.s32 2, %v92
    %v94 = vrot.slane %v39, %v93
    %v95 = vmul.f32 %v90, %v86
    %v96 = vmul.f32 %v94, %v85
    %v97 = vadd.f32 %v78, %v95
    %v98 = vadd.f32 %v79, %v96
    %99 = vrot.lane.b32.xlu0 %v78, 112
    %v100 = vpop.permute.xlu0 %99
    %101 = vrot.lane.b32.xlu0 %v79, 112
    %v102 = vpop.permute.xlu0 %101
    %vm103 = vcmp.lt.s32.totalorder %v45, 112
    %v104 = vsel %vm103, %v100, %v102
    %v105 = vsel %vm103, %v102, %v100
    %v106 = vlaneseq
    %v107 = vshrl.u32 %v106, 7
    %v108 = vsub.s32 3, %v107
    %v109 = vrot.slane %v38, %v108
    %v110 = vlaneseq
    %v111 = vshrl.u32 %v110, 7
    %v112 = vsub.s32 3, %v111
    %v113 = vrot.slane %v39, %v112
    %v114 = vmul.f32 %v109, %v104
    %v115 = vmul.f32 %v113, %v105
    %v116 = vadd.f32 %v97, %v114
    %v117 = vadd.f32 %v98, %v115
    %v118 = vlaneseq
    %v119 = vshrl.u32 %v118, 7
    %v120 = vsub.s32 4, %v119
    %v121 = vrot.slane %v38, %v120
    %v122 = vlaneseq
    %v123 = vshrl.u32 %v122, 7
    %v124 = vsub.s32 4, %v123
    %v125 = vrot.slane %v39, %v124
    %v126 = vmul.f32 %v116, %v121
    %v127 = vmul.f32 %v117, %v125
    %128 = vst [vmem:[#allocation7] sm:$0xff] %v126
    %129 = vst [vmem:[#allocation7 + $0x8] sm:$0xff] %v127
    // Predicated region
    $region18: #{tpu_custom_call.1} parent=1 // pred_check
      _
    $region19: #{tpu_custom_call.1} parent=1 // pred_check_branch
      %131 = sbr.rel (0) target = $region21
    $region20: #{tpu_custom_call.1} parent=1 // pred_region
      %s133 = ssub.s32 256, 256
      %134 = vsyncadd [#allocation4], %s133
      %s136 = sshll.u32 [#allocation7], 4
      %s137 = int_to_ptr.vmem [resolvable:$true] %s136
      %139 = dma.vmem_to_hbm [thread:$0]  %s137, 256, %s2, [#allocation4]
    $region21: #{tpu_custom_call.1} parent=1 // pred_fallthru
      _
    // Predicated region
    $region22: #{tpu_custom_call.1} parent=1 // pred_check
      _
    $region23: #{tpu_custom_call.1} parent=1 // pred_check_branch
      %141 = sbr.rel (0) target = $region25
    $region24: #{tpu_custom_call.1} parent=1 // pred_region
      %142 = dma.done [#allocation4], 256
    $region25: #{tpu_custom_call.1} parent=1 // pred_fallthru
      _
    %143 = vsyncpa [#allocation3], 1
    %144 = vsyncpa [#allocation6], 1
    %145 = vsyncpa [#allocation4], 1

</llo_original>
